<compile_context>
chip_gen: v7x
topology: tpu7x:2x2x1
jax: 0.10.0
libtpu: 0.0.40
codegen_flags: <defaults>
</compile_context>

<pallas_src>
import jax
import jax.numpy as jnp
import numpy as np
from jax.experimental import pallas as pl
from jax.experimental.pallas import tpu as pltpu


# ----------------------------------------------------------------------------
# Kernel: rotate one (1, tn, D) block of q and of k.
# ----------------------------------------------------------------------------
def rope_kernel(q_ref, k_ref, trig_ref, qo_ref, ko_ref):
    cos = trig_ref[0]       # (tn, D)  cos on rotated lanes, 1 on pass-through lanes
    sin_nxt = trig_ref[1]   # (tn, D)  -sin on even rotated lanes, 0 elsewhere
    sin_prv = trig_ref[2]   # (tn, D)   sin on odd  rotated lanes, 0 elsewhere

    def rotate(x):          # x: (tn, D)
        # Static rolls lower to slice+concat; wrap-around lanes are killed by the
        # exact zeros baked into sin_nxt / sin_prv, so no masking is needed.
        nxt = jnp.roll(x, -1, axis=-1)   # nxt[j] = x[j+1]
        prv = jnp.roll(x, 1, axis=-1)    # prv[j] = x[j-1]
        return x * cos + nxt * sin_nxt + prv * sin_prv

    qo_ref[0] = rotate(q_ref[0])
    ko_ref[0] = rotate(k_ref[0])


def _choose_seq_tile(n, max_tile=512):
    """Full axis if small; otherwise a multiple-of-8 divisor (keeps blocks legal)."""
    if n <= max_tile:
        return n
    for t in (512, 256, 128, 64, 32, 16, 8):
        if n % t == 0:
            return t
    return n


# ----------------------------------------------------------------------------
# Wrapper
# ----------------------------------------------------------------------------
def rotational_positional_encoding_1d(q, k, theta=10000.0):
    """q, k: (B, N, channels) -> (rotated q, rotated k).  Single fused pallas_call."""
    B, N, D = q.shape
    assert k.shape == (B, N, D)
    rot_dim = D // 2
    assert rot_dim % 2 == 0 and 0 < rot_dim < D, "channels must be a multiple of 4"

    # ---- host-side cached position tables (the PyTorch module caches freqs too) ----
    inv_freq = 1.0 / (theta ** (np.arange(0, rot_dim, 2, dtype=np.float32) / rot_dim))
    pos = np.arange(N, dtype=np.float32)
    freqs = np.einsum("i,j->ij", pos, inv_freq).astype(np.float32)  # (N, rot_dim // 2)
    freqs = np.repeat(freqs, 2, axis=-1)                            # f0,f0,f1,f1,...
    cos_r = np.cos(freqs)
    sin_r = np.sin(freqs)
    even = (np.arange(rot_dim) % 2 == 0)

    cos_full = np.ones((N, D), dtype=np.float32)
    cos_full[:, :rot_dim] = cos_r
    sin_nxt_full = np.zeros((N, D), dtype=np.float32)
    sin_nxt_full[:, :rot_dim] = np.where(even, -sin_r, 0.0)         # multiplies x[j+1]
    sin_prv_full = np.zeros((N, D), dtype=np.float32)
    sin_prv_full[:, :rot_dim] = np.where(even, 0.0, sin_r)          # multiplies x[j-1]
    trig = jnp.asarray(np.stack([cos_full, sin_nxt_full, sin_prv_full]))  # (3, N, D)

    tn = _choose_seq_tile(N)
    grid = (B, N // tn)

    data_spec = pl.BlockSpec((1, tn, D), lambda b, n: (b, n, 0))
    trig_spec = pl.BlockSpec((3, tn, D), lambda b, n: (0, n, 0))

    return pl.pallas_call(
        rope_kernel,
        out_shape=(jax.ShapeDtypeStruct((B, N, D), q.dtype),
                   jax.ShapeDtypeStruct((B, N, D), k.dtype)),
        grid=grid,
        in_specs=[data_spec, data_spec, trig_spec],
        out_specs=(data_spec, data_spec),
        compiler_params=pltpu.CompilerParams(
            dimension_semantics=("parallel", "parallel")),
    )(q, k, trig)


# ----------------------------------------------------------------------------
# Pure-JAX reference mirroring rotary-embedding-torch exactly.
# ----------------------------------------------------------------------------
def reference_rope(x, theta=10000.0):
    B, N, D = x.shape
    rot_dim = D // 2
    inv_freq = 1.0 / (theta ** (jnp.arange(0, rot_dim, 2, dtype=jnp.float32) / rot_dim))
    pos = jnp.arange(N, dtype=jnp.float32)
    freqs = jnp.einsum("i,j->ij", pos, inv_freq)
    freqs = jnp.repeat(freqs, 2, axis=-1)
    cos, sin = jnp.cos(freqs), jnp.sin(freqs)
    x_rot, x_pass = x[..., :rot_dim], x[..., rot_dim:]
    x1 = x_rot[..., 0::2]
    x2 = x_rot[..., 1::2]
    rh = jnp.stack([-x2, x1], axis=-1).reshape(x_rot.shape)   # interleaved rotate_half
    return jnp.concatenate([x_rot * cos + rh * sin, x_pass], axis=-1)


# ----------------------------------------------------------------------------
if __name__ == "__main__":
    B, N, channels = 2, 8, 32      # rot_dim = 16 rotated lanes, 16 pass-through

    key = jax.random.PRNGKey(0)
    kq, kk = jax.random.split(key)
    q = jax.random.normal(kq, (B, N, channels), dtype=jnp.float32)
    k = jax.random.normal(kk, (B, N, channels), dtype=jnp.float32)

    q_out, k_out = rotational_positional_encoding_1d(q, k)
    (q_out, k_out) = jax.block_until_ready((q_out, k_out))

    np.testing.assert_allclose(np.asarray(q_out), np.asarray(reference_rope(q)),
                               rtol=1e-5, atol=1e-5)
    np.testing.assert_allclose(np.asarray(k_out), np.asarray(reference_rope(k)),
                               rtol=1e-5, atol=1e-5)
    print("KERNEL_OK")
</pallas_src>

<mosaic_0001>
module attributes {stable_mosaic.version = 11 : i64} {
  func.func @rope_kernel(%arg0: i32, %arg1: i32, %arg2: memref<1x8x32xf32, #tpu.memory_space<vmem>>, %arg3: memref<1x8x32xf32, #tpu.memory_space<vmem>>, %arg4: memref<3x8x32xf32, #tpu.memory_space<vmem>>, %arg5: memref<1x8x32xf32, #tpu.memory_space<vmem>>, %arg6: memref<1x8x32xf32, #tpu.memory_space<vmem>>) attributes {dimension_semantics = [#tpu.dimension_semantics<parallel>, #tpu.dimension_semantics<parallel>], iteration_bounds = array<i64: 2, 1>, scalar_prefetch = 0 : i64, scratch_operands = 0 : i64, tpu.core_type = #tpu.core_type<tc>, window_params = [{transform_indices = @transform_0, window_bounds = array<i64: 1, 8, 32>}, {transform_indices = @transform_1, window_bounds = array<i64: 1, 8, 32>}, {transform_indices = @transform_2, window_bounds = array<i64: 3, 8, 32>}, {transform_indices = @transform_3, window_bounds = array<i64: 1, 8, 32>}, {transform_indices = @transform_4, window_bounds = array<i64: 1, 8, 32>}]} {
    %c0 = arith.constant 0 : index
    %c0_0 = arith.constant 0 : index
    %c0_1 = arith.constant 0 : index
    %0 = vector.load %arg4[%c0, %c0_0, %c0_1] : memref<3x8x32xf32, #tpu.memory_space<vmem>>, vector<1x8x32xf32>
    %1 = vector.shape_cast %0 : vector<1x8x32xf32> to vector<8x32xf32>
    %c1 = arith.constant 1 : index
    %c0_2 = arith.constant 0 : index
    %c0_3 = arith.constant 0 : index
    %2 = vector.load %arg4[%c1, %c0_2, %c0_3] : memref<3x8x32xf32, #tpu.memory_space<vmem>>, vector<1x8x32xf32>
    %3 = vector.shape_cast %2 : vector<1x8x32xf32> to vector<8x32xf32>
    %c2 = arith.constant 2 : index
    %c0_4 = arith.constant 0 : index
    %c0_5 = arith.constant 0 : index
    %4 = vector.load %arg4[%c2, %c0_4, %c0_5] : memref<3x8x32xf32, #tpu.memory_space<vmem>>, vector<1x8x32xf32>
    %5 = vector.shape_cast %4 : vector<1x8x32xf32> to vector<8x32xf32>
    %c0_6 = arith.constant 0 : index
    %c0_7 = arith.constant 0 : index
    %c0_8 = arith.constant 0 : index
    %6 = vector.load %arg2[%c0_6, %c0_7, %c0_8] : memref<1x8x32xf32, #tpu.memory_space<vmem>>, vector<1x8x32xf32>
    %7 = vector.shape_cast %6 : vector<1x8x32xf32> to vector<8x32xf32>
    %8 = vector.extract_strided_slice %7 {offsets = [0, 1], sizes = [8, 31], strides = [1, 1]} : vector<8x32xf32> to vector<8x31xf32>
    %9 = vector.extract_strided_slice %7 {offsets = [0, 0], sizes = [8, 1], strides = [1, 1]} : vector<8x32xf32> to vector<8x1xf32>
    %10 = tpu.concatenate %8, %9 in 1 : vector<8x31xf32>, vector<8x1xf32> -> vector<8x32xf32>
    %11 = vector.extract_strided_slice %7 {offsets = [0, 31], sizes = [8, 1], strides = [1, 1]} : vector<8x32xf32> to vector<8x1xf32>
    %12 = vector.extract_strided_slice %7 {offsets = [0, 0], sizes = [8, 31], strides = [1, 1]} : vector<8x32xf32> to vector<8x31xf32>
    %13 = tpu.concatenate %11, %12 in 1 : vector<8x1xf32>, vector<8x31xf32> -> vector<8x32xf32>
    %14 = arith.mulf %7, %1 : vector<8x32xf32>
    %15 = arith.mulf %10, %3 : vector<8x32xf32>
    %16 = arith.addf %14, %15 : vector<8x32xf32>
    %17 = arith.mulf %13, %5 : vector<8x32xf32>
    %18 = arith.addf %16, %17 : vector<8x32xf32>
    %c0_9 = arith.constant 0 : index
    %c0_10 = arith.constant 0 : index
    %c0_11 = arith.constant 0 : index
    %19 = vector.load %arg5[%c0_9, %c0_10, %c0_11] : memref<1x8x32xf32, #tpu.memory_space<vmem>>, vector<1x8x32xf32>
    %20 = vector.shape_cast %19 : vector<1x8x32xf32> to vector<8x32xf32>
    %21 = vector.shape_cast %18 : vector<8x32xf32> to vector<1x8x32xf32>
    tpu.vector_store %arg5[%c0_9, %c0_10, %c0_11], %21 {strides = array<i32>} : memref<1x8x32xf32, #tpu.memory_space<vmem>>, vector<1x8x32xf32>,
    %c0_12 = arith.constant 0 : index
    %c0_13 = arith.constant 0 : index
    %c0_14 = arith.constant 0 : index
    %22 = vector.load %arg3[%c0_12, %c0_13, %c0_14] : memref<1x8x32xf32, #tpu.memory_space<vmem>>, vector<1x8x32xf32>
    %23 = vector.shape_cast %22 : vector<1x8x32xf32> to vector<8x32xf32>
    %24 = vector.extract_strided_slice %23 {offsets = [0, 1], sizes = [8, 31], strides = [1, 1]} : vector<8x32xf32> to vector<8x31xf32>
    %25 = vector.extract_strided_slice %23 {offsets = [0, 0], sizes = [8, 1], strides = [1, 1]} : vector<8x32xf32> to vector<8x1xf32>
    %26 = tpu.concatenate %24, %25 in 1 : vector<8x31xf32>, vector<8x1xf32> -> vector<8x32xf32>
    %27 = vector.extract_strided_slice %23 {offsets = [0, 31], sizes = [8, 1], strides = [1, 1]} : vector<8x32xf32> to vector<8x1xf32>
    %28 = vector.extract_strided_slice %23 {offsets = [0, 0], sizes = [8, 31], strides = [1, 1]} : vector<8x32xf32> to vector<8x31xf32>
    %29 = tpu.concatenate %27, %28 in 1 : vector<8x1xf32>, vector<8x31xf32> -> vector<8x32xf32>
    %30 = arith.mulf %23, %1 : vector<8x32xf32>
    %31 = arith.mulf %26, %3 : vector<8x32xf32>
    %32 = arith.addf %30, %31 : vector<8x32xf32>
    %33 = arith.mulf %29, %5 : vector<8x32xf32>
    %34 = arith.addf %32, %33 : vector<8x32xf32>
    %c0_15 = arith.constant 0 : index
    %c0_16 = arith.constant 0 : index
    %c0_17 = arith.constant 0 : index
    %35 = vector.load %arg6[%c0_15, %c0_16, %c0_17] : memref<1x8x32xf32, #tpu.memory_space<vmem>>, vector<1x8x32xf32>
    %36 = vector.shape_cast %35 : vector<1x8x32xf32> to vector<8x32xf32>
    %37 = vector.shape_cast %34 : vector<8x32xf32> to vector<1x8x32xf32>
    tpu.vector_store %arg6[%c0_15, %c0_16, %c0_17], %37 {strides = array<i32>} : memref<1x8x32xf32, #tpu.memory_space<vmem>>, vector<1x8x32xf32>,
    return
  }
  func.func @transform_0(%arg0: i32, %arg1: i32) -> (i32, i32, i32) {
    %c0_i32 = arith.constant 0 : i32
    %c0_i32_0 = arith.constant 0 : i32
    return %arg0, %arg1, %c0_i32 : i32, i32, i32
  }
  func.func @transform_1(%arg0: i32, %arg1: i32) -> (i32, i32, i32) {
    %c0_i32 = arith.constant 0 : i32
    %c0_i32_0 = arith.constant 0 : i32
    return %arg0, %arg1, %c0_i32 : i32, i32, i32
  }
  func.func @transform_2(%arg0: i32, %arg1: i32) -> (i32, i32, i32) {
    %c0_i32 = arith.constant 0 : i32
    %c0_i32_0 = arith.constant 0 : i32
    %c0_i32_1 = arith.constant 0 : i32
    return %c0_i32, %arg1, %c0_i32_0 : i32, i32, i32
  }
  func.func @transform_3(%arg0: i32, %arg1: i32) -> (i32, i32, i32) {
    %c0_i32 = arith.constant 0 : i32
    %c0_i32_0 = arith.constant 0 : i32
    return %arg0, %arg1, %c0_i32 : i32, i32, i32
  }
  func.func @transform_4(%arg0: i32, %arg1: i32) -> (i32, i32, i32) {
    %c0_i32 = arith.constant 0 : i32
    %c0_i32_0 = arith.constant 0 : i32
    return %arg0, %arg1, %c0_i32 : i32, i32, i32
  }
}

</mosaic_0001>

<llo_original>
// kernel: tpu_custom_call.1
$region0: #{tpu_custom_call.1}
  #allocation0 [shape = 'u32[]', space=smem, size = 0x4, offset = 0x4, fixed_abs, tag = 'smem constant byte address 0x4 - core index']
  #allocation1 [shape = 'u32[144,128]{1,0:T(1,128)}', space=vmem, size = 0x12000, scoped, tag = 'internal scratch']
  %s0 = inlined_call_operand.hbm [shape: f32[2,8,32], index: 0, kind: input, shape index: {}]
  %s1 = inlined_call_operand.hbm [shape: f32[2,8,32], index: 1, kind: input, shape index: {}]
  %s2 = inlined_call_operand.hbm [shape: f32[3,8,32], index: 2, kind: input, shape index: {}]
  %s3 = inlined_call_operand.hbm [shape: f32[2,8,32], index: 3, kind: output, shape index: {0}]
  %s4 = inlined_call_operand.hbm [shape: f32[2,8,32], index: 4, kind: output, shape index: {1}]
  %5 = xla_tuple %s3, %s4
  %s6 = sld [smem:[#allocation0]]
  $region65: #{tpu_custom_call.1} parent=0
    _
  %s8 = ssub.s32 1, %s6
  %s9 = scalar_select 0, %s8, %s6
  $region1: #{tpu_custom_call.1} parent=0
    #allocation2 [shape = 'u8[8192]{0}', space=vmem, size = 0x2000, scoped, tag = 'input window, operand 0']
    #allocation3 [shape = 's32[2]{0}', space=sflag, size = 0x8, scoped, tag = 'scoped memory for tpu_custom_call.1']
    #allocation4 [shape = 's32[2]{0}', space=sflag, size = 0x8, scoped, tag = 'scoped memory for tpu_custom_call.1']
    #allocation5 [shape = 'u8[8192]{0}', space=vmem, size = 0x2000, scoped, tag = 'input window, operand 1']
    #allocation6 [shape = 's32[2]{0}', space=sflag, size = 0x8, scoped, tag = 'scoped memory for tpu_custom_call.1']
    #allocation7 [shape = 'u8[12288]{0}', space=vmem, size = 0x3000, scoped, tag = 'input window, operand 2, single buffered']
    #allocation8 [shape = 'u8[8192]{0}', space=vmem, size = 0x2000, scoped, tag = 'output window, operand 0']
    #allocation9 [shape = 'u8[8192]{0}', space=vmem, size = 0x2000, scoped, tag = 'output window, operand 1']
    #allocation10 [shape = 's32[2]{0}', space=sflag, size = 0x8, scoped, tag = 'scoped memory for tpu_custom_call.1']
    %10 = vsyncpa [#allocation3], 0
    %s11 = scalar_lea.sflag [#allocation3], 1
    %12 = vsyncpa %s11, 0
    %13 = vsyncpa [#allocation6], 0
    %s14 = scalar_lea.sflag [#allocation6], 1
    %15 = vsyncpa %s14, 0
    %16 = vsyncpa [#allocation4], 0
    %s17 = scalar_lea.sflag [#allocation4], 1
    %18 = vsyncpa %s17, 0
    %19 = vsyncpa [#allocation10], 0
    %s20 = scalar_lea.sflag [#allocation10], 1
    %21 = vsyncpa %s20, 0
    loop: start=0, step=1, limit=4
    $region2: #{tpu_custom_call.1} parent=1 // loop_pre_header
      _
    $region3: #{tpu_custom_call.1} parent=1 // loop_header
      %s23 = sphi 0, %s27
      %p24 = scmp.ge.s32.totalorder %s23, 4
      %s30 = sphi 0, %s42
      %s31 = sphi 0, %s38
      %s32 = sphi 0, %s30
      %s33 = sphi 0, %s31
      %s34 = sphi 0, %s32
      %s35 = sphi 0, %s33
      %s47 = sphi 0, %s49
      %s50 = sphi 0, %s47
      %s51 = sphi 0, %s50
      %s67 = sphi 0, %s51
      %s75 = sphi 0, %s77
      %s78 = sphi 0, %s75
      %s79 = sphi 0, %s78
      %s95 = sphi 0, %s79
      %s101 = sphi 0, %s103
      %s104 = sphi 0, %s101
      %s105 = sphi 0, %s104
      %s121 = sphi 0, %s105
      %s129 = sphi 0, %s131
      %s132 = sphi 0, %s129
      %s133 = sphi 0, %s132
      %s149 = sphi 0, %s133
      %s157 = sphi 0, %s159
      %s160 = sphi 0, %s157
      %s161 = sphi 0, %s160
      %s177 = sphi 0, %s161
    $region4: #{tpu_custom_call.1} parent=1 // loop_header_branch
      %26 = sbr.rel (%p24) target = $region8
    $region5: #{tpu_custom_call.1} parent=1 // loop_body
      %s28 = ssub.s32 %s23, 1
      %s29 = ssub.s32 %s23, 2
      %s36 = sadd.s32 1, %s31
      %p37 = scmp.ge.s32.totalorder %s36, 1
      %s38 = scalar_select %p37, 0, %s36
      %s39 = sadd.s32 1, %s30
      %s40 = scalar_select %p37, %s39, %s30
      %p41 = scmp.ge.s32.totalorder %s40, 2
      %s42 = scalar_select %p41, 0, %s40
      %s43 = ssub.s32 %s30, %s42
      %s44 = ssub.s32 %s31, %s38
      %s45 = sor.u32 %s43, %s44
      %p46 = scmp.eq.s32.totalorder %s45, 0
      %s48 = sadd.s32 %s47, 1
      %s49 = scalar_select %p46, %s47, %s48
      %p52 = pneg %p46
      %p53 = scmp.eq.s32.totalorder %s23, 1
      %p54 = por %p52, %p53
      %p55 = scmp.ne.s32.totalorder %s47, %s50
      %p56 = scmp.eq.s32.totalorder %s23, 0
      %p57 = por %p55, %p56
      %p58 = scmp.ne.s32.totalorder %s47, %s50
      %p59 = scmp.eq.s32.totalorder %s28, 1
      %p60 = por %p58, %p59
      %p61 = scmp.ne.s32.totalorder %s50, %s51
      %p62 = scmp.eq.s32.totalorder %s28, 0
      %p63 = por %p61, %p62
      %p64 = scmp.ne.s32.totalorder %s50, %s51
      %p65 = scmp.eq.s32.totalorder %s29, 1
      %p66 = por %p64, %p65
      %p68 = scmp.ne.s32.totalorder %s51, %s67
      %p69 = scmp.eq.s32.totalorder %s29, 0
      %p70 = por %p68, %p69
      %s71 = ssub.s32 %s30, %s42
      %s72 = ssub.s32 %s31, %s38
      %s73 = sor.u32 %s71, %s72
      %p74 = scmp.eq.s32.totalorder %s73, 0
      %s76 = sadd.s32 %s75, 1
      %s77 = scalar_select %p74, %s75, %s76
      %p80 = pneg %p74
      %p81 = scmp.eq.s32.totalorder %s23, 1
      %p82 = por %p80, %p81
      %p83 = scmp.ne.s32.totalorder %s75, %s78
      %p84 = scmp.eq.s32.totalorder %s23, 0
      %p85 = por %p83, %p84
      %p86 = scmp.ne.s32.totalorder %s75, %s78
      %p87 = scmp.eq.s32.totalorder %s28, 1
      %p88 = por %p86, %p87
      %p89 = scmp.ne.s32.totalorder %s78, %s79
      %p90 = scmp.eq.s32.totalorder %s28, 0
      %p91 = por %p89, %p90
      %p92 = scmp.ne.s32.totalorder %s78, %s79
      %p93 = scmp.eq.s32.totalorder %s29, 1
      %p94 = por %p92, %p93
      %p96 = scmp.ne.s32.totalorder %s79, %s95
      %p97 = scmp.eq.s32.totalorder %s29, 0
      %p98 = por %p96, %p97
      %s99 = ssub.s32 %s31, %s38
      %p100 = scmp.eq.s32.totalorder %s99, 0
      %s102 = sadd.s32 %s101, 1
      %s103 = scalar_select %p100, %s101, %s102
      %p106 = pneg %p100
      %p107 = scmp.eq.s32.totalorder %s23, 1
      %p108 = por %p106, %p107
      %p109 = scmp.ne.s32.totalorder %s101, %s104
      %p110 = scmp.eq.s32.totalorder %s23, 0
      %p111 = por %p109, %p110
      %p112 = scmp.ne.s32.totalorder %s101, %s104
      %p113 = scmp.eq.s32.totalorder %s28, 1
      %p114 = por %p112, %p113
      %p115 = scmp.ne.s32.totalorder %s104, %s105
      %p116 = scmp.eq.s32.totalorder %s28, 0
      %p117 = por %p115, %p116
      %p118 = scmp.ne.s32.totalorder %s104, %s105
      %p119 = scmp.eq.s32.totalorder %s29, 1
      %p120 = por %p118, %p119
      %p122 = scmp.ne.s32.totalorder %s105, %s121
      %p123 = scmp.eq.s32.totalorder %s29, 0
      %p124 = por %p122, %p123
      %s125 = ssub.s32 %s30, %s42
      %s126 = ssub.s32 %s31, %s38
      %s127 = sor.u32 %s125, %s126
      %p128 = scmp.eq.s32.totalorder %s127, 0
      %s130 = sadd.s32 %s129, 1
      %s131 = scalar_select %p128, %s129, %s130
      %p134 = pneg %p128
      %p135 = scmp.eq.s32.totalorder %s23, 1
      %p136 = por %p134, %p135
      %p137 = scmp.ne.s32.totalorder %s129, %s132
      %p138 = scmp.eq.s32.totalorder %s23, 0
      %p139 = por %p137, %p138
      %p140 = scmp.ne.s32.totalorder %s129, %s132
      %p141 = scmp.eq.s32.totalorder %s28, 1
      %p142 = por %p140, %p141
      %p143 = scmp.ne.s32.totalorder %s132, %s133
      %p144 = scmp.eq.s32.totalorder %s28, 0
      %p145 = por %p143, %p144
      %p146 = scmp.ne.s32.totalorder %s132, %s133
      %p147 = scmp.eq.s32.totalorder %s29, 1
      %p148 = por %p146, %p147
      %p150 = scmp.ne.s32.totalorder %s133, %s149
      %p151 = scmp.eq.s32.totalorder %s29, 0
      %p152 = por %p150, %p151
      %s153 = ssub.s32 %s30, %s42
      %s154 = ssub.s32 %s31, %s38
      %s155 = sor.u32 %s153, %s154
      %p156 = scmp.eq.s32.totalorder %s155, 0
      %s158 = sadd.s32 %s157, 1
      %s159 = scalar_select %p156, %s157, %s158
      %p162 = pneg %p156
      %p163 = scmp.eq.s32.totalorder %s23, 1
      %p164 = por %p162, %p163
      %p165 = scmp.ne.s32.totalorder %s157, %s160
      %p166 = scmp.eq.s32.totalorder %s23, 0
      %p167 = por %p165, %p166
      %p168 = scmp.ne.s32.totalorder %s157, %s160
      %p169 = scmp.eq.s32.totalorder %s28, 1
      %p170 = por %p168, %p169
      %p171 = scmp.ne.s32.totalorder %s160, %s161
      %p172 = scmp.eq.s32.totalorder %s28, 0
      %p173 = por %p171, %p172
      %p174 = scmp.ne.s32.totalorder %s160, %s161
      %p175 = scmp.eq.s32.totalorder %s29, 1
      %p176 = por %p174, %p175
      %p178 = scmp.ne.s32.totalorder %s161, %s177
      %p179 = scmp.eq.s32.totalorder %s29, 0
      %p180 = por %p178, %p179
      %p181 = scmp.le.s32.totalorder 1, %s23
      %p182 = scmp.lt.s32.totalorder %s23, 3
      %p183 = pnand %p181, %p182
      %p184 = pneg %p183
      // Predicated region
      $region9: #{tpu_custom_call.1} parent=5 // pred_check
        _
      $region10: #{tpu_custom_call.1} parent=5 // pred_check_branch
        %186 = sbr.rel (%p183) target = $region12
      $region11: #{tpu_custom_call.1} parent=5 // pred_region
        %s187 = ssub.s32 %s23, 1
        // Predicated region
        $region13: #{tpu_custom_call.1} parent=11 // pred_check
          %p188 = pneg %p117
        $region14: #{tpu_custom_call.1} parent=11 // pred_check_branch
          %190 = sbr.rel (%p188) target = $region16
        $region15: #{tpu_custom_call.1} parent=11 // pred_region
          %s192 = ssub.s32 384, 384
          %193 = vsyncadd [#allocation6], %s192
          %s194 = smul.addr %s33, 128
          %s195 = scalar_lea.hbm %s2, %s194
          %s196 = sshll.u32 [#allocation7], 4
          %s197 = int_to_ptr.vmem [resolvable:$true] %s196
          %202 = dma.hbm_to_vmem [thread:$0]  %s195, 384, %s197, [#allocation6], 128, 128, 8
        $region16: #{tpu_custom_call.1} parent=11 // pred_fallthru
          _
      $region12: #{tpu_custom_call.1} parent=5 // pred_fallthru
        _
      %p203 = scmp.lt.s32.totalorder %s23, 2
      // Predicated region
      $region17: #{tpu_custom_call.1} parent=5 // pred_check
        %p204 = pneg %p203
      $region18: #{tpu_custom_call.1} parent=5 // pred_check_branch
        %206 = sbr.rel (%p204) target = $region20
      $region19: #{tpu_custom_call.1} parent=5 // pred_region
        // Predicated region
        $region21: #{tpu_custom_call.1} parent=19 // pred_check
          %p207 = pneg %p57
        $region22: #{tpu_custom_call.1} parent=19 // pred_check_branch
          %209 = sbr.rel (%p207) target = $region24
        $region23: #{tpu_custom_call.1} parent=19 // pred_region
          %s210 = sand.u32 %s47, 1
          %s211 = scalar_lea.sflag [#allocation3], %s210
          %s212 = sand.u32 %s47, 1
          %s213 = smul.addr %s212, 8
          %s214 = scalar_lea.vmem [#allocation2], %s213
          %s216 = ssub.s32 128, 128
          %217 = vsyncadd %s211, %s216
          %s218 = sadd.s32 %s31, %s30
          %s219 = smul.addr %s218, 128
          %s220 = scalar_lea.hbm %s0, %s219
          %s222 = sshll.u32 %s214, 4
          %s223 = int_to_ptr.vmem [resolvable:$true] %s222
          %225 = dma.hbm_to_vmem [thread:$0]  %s220, 128, %s223, %s211
        $region24: #{tpu_custom_call.1} parent=19 // pred_fallthru
          _
        // Predicated region
        $region25: #{tpu_custom_call.1} parent=19 // pred_check
          %p226 = pneg %p85
        $region26: #{tpu_custom_call.1} parent=19 // pred_check_branch
          %228 = sbr.rel (%p226) target = $region28
        $region27: #{tpu_custom_call.1} parent=19 // pred_region
          %s229 = sand.u32 %s23, 1
          %s230 = scalar_lea.sflag [#allocation6], %s229
          %s231 = sand.u32 %s75, 1
          %s232 = smul.addr %s231, 8
          %s233 = scalar_lea.vmem [#allocation5], %s232
          %s235 = ssub.s32 128, 128
          %236 = vsyncadd %s230, %s235
          %s237 = sadd.s32 %s31, %s30
          %s238 = smul.addr %s237, 128
          %s239 = scalar_lea.hbm %s1, %s238
          %s241 = sshll.u32 %s233, 4
          %s242 = int_to_ptr.vmem [resolvable:$true] %s241
          %244 = dma.hbm_to_vmem [thread:$0]  %s239, 128, %s242, %s230
        $region28: #{tpu_custom_call.1} parent=19 // pred_fallthru
          _
      $region20: #{tpu_custom_call.1} parent=5 // pred_fallthru
        _
      %p245 = scmp.le.s32.totalorder 1, %s23
      %p246 = scmp.lt.s32.totalorder %s23, 3
      %p247 = pnand %p245, %p246
      %p248 = pneg %p247
      // Predicated region
      $region29: #{tpu_custom_call.1} parent=5 // pred_check
        _
      $region30: #{tpu_custom_call.1} parent=5 // pred_check_branch
        %250 = sbr.rel (%p247) target = $region32
      $region31: #{tpu_custom_call.1} parent=5 // pred_region
        %s251 = ssub.s32 %s23, 1
        %s252 = sand.u32 %s50, 1
        %s253 = scalar_lea.sflag [#allocation3], %s252
        %s254 = sand.u32 %s50, 1
        %s255 = smul.addr %s254, 8
        %s256 = scalar_lea.vmem [#allocation2], %s255
        // Predicated region
        $region33: #{tpu_custom_call.1} parent=31 // pred_check
          %p257 = pneg %p63
        $region34: #{tpu_custom_call.1} parent=31 // pred_check_branch
          %259 = sbr.rel (%p257) target = $region36
        $region35: #{tpu_custom_call.1} parent=31 // pred_region
          %260 = dma.done %s253, 128
        $region36: #{tpu_custom_call.1} parent=31 // pred_fallthru
          _
        %s261 = sand.u32 %s28, 1
        %s262 = scalar_lea.sflag [#allocation6], %s261
        %s263 = sand.u32 %s78, 1
        %s264 = smul.addr %s263, 8
        %s265 = scalar_lea.vmem [#allocation5], %s264
        // Predicated region
        $region37: #{tpu_custom_call.1} parent=31 // pred_check
          %p266 = pneg %p91
        $region38: #{tpu_custom_call.1} parent=31 // pred_check_branch
          %268 = sbr.rel (%p266) target = $region40
        $region39: #{tpu_custom_call.1} parent=31 // pred_region
          %269 = dma.done %s262, 128
        $region40: #{tpu_custom_call.1} parent=31 // pred_fallthru
          _
        // Predicated region
        $region41: #{tpu_custom_call.1} parent=31 // pred_check
          %p270 = pneg %p117
        $region42: #{tpu_custom_call.1} parent=31 // pred_check_branch
          %272 = sbr.rel (%p270) target = $region44
        $region43: #{tpu_custom_call.1} parent=31 // pred_region
          %273 = dma.done [#allocation6], 384
        $region44: #{tpu_custom_call.1} parent=31 // pred_fallthru
          _
        %s274 = sand.u32 %s50, 1
        %s275 = scalar_lea.sflag [#allocation3], %s274
        %s276 = sand.u32 %s50, 1
        %s277 = smul.addr %s276, 8
        %s278 = scalar_lea.vmem [#allocation2], %s277
        %p279 = pneg %p63
        %p280 = pneg %p60
        %s281 = sand.u32 %s28, 1
        %s282 = scalar_lea.sflag [#allocation6], %s281
        %s283 = sand.u32 %s78, 1
        %s284 = smul.addr %s283, 8
        %s285 = scalar_lea.vmem [#allocation5], %s284
        %p286 = pneg %p91
        %p287 = pneg %p88
        %p288 = pneg %p117
        %p289 = pneg %p114
        %p290 = pneg %p145
        %p291 = pneg %p142
        %s292 = sand.u32 %s132, 1
        %s293 = scalar_lea.sflag [#allocation4], %s292
        %s294 = sand.u32 %s132, 1
        %s295 = smul.addr %s294, 8
        %s296 = scalar_lea.vmem [#allocation8], %s295
        %p297 = pneg %p173
        %p298 = pneg %p170
        %s299 = sand.u32 %s160, 1
        %s300 = scalar_lea.sflag [#allocation10], %s299
        %s301 = sand.u32 %s160, 1
        %s302 = smul.addr %s301, 8
        %s303 = scalar_lea.vmem [#allocation9], %s302
        %v304 = vld [vmem:[#allocation7] sm:$0xff]
        %s305 = scalar_lea.vmem [#allocation7], 8
        %v306 = vld [vmem:[%s305] sm:$0xff]
        %s307 = scalar_lea.vmem [#allocation7], 16
        %v308 = vld [vmem:[%s307] sm:$0xff]
        %v309 = vld [vmem:[%s256] sm:$0xff]
        %311 = vrot.lane.b32.xlu0 %v309, 127
        %v312 = vpop.permute.xlu0 %311
        %314 = vrot.lane.b32.xlu0 %v309, 31
        %v315 = vpop.permute.xlu0 %314
        %vm317 = vcmask 252928
        %v318 = vsel %vm317, %v312, %v315
        %319 = vrot.lane.b32.xlu0 %v309, 97
        %v320 = vpop.permute.xlu0 %319
        %322 = vrot.lane.b32.xlu0 %v309, 1
        %v323 = vpop.permute.xlu0 %322
        %vm325 = vcmask 7168
        %v326 = vsel %vm325, %v320, %v323
        %v327 = vmul.f32 %v309, %v304
        %v328 = vmul.f32 %v318, %v306
        %v329 = vadd.f32 %v327, %v328
        %v330 = vmul.f32 %v326, %v308
        %v331 = vadd.f32 %v329, %v330
        %vm332 = vcmask 261120
        %333 = vst.msk [vmem:[%s296] sm:$0xff] %vm332, %v331
        %v334 = vld [vmem:[%s265] sm:$0xff]
        %336 = vrot.lane.b32.xlu0 %v334, 127
        %v337 = vpop.permute.xlu0 %336
        %339 = vrot.lane.b32.xlu0 %v334, 31
        %v340 = vpop.permute.xlu0 %339
        %v342 = vsel %vm317, %v337, %v340
        %343 = vrot.lane.b32.xlu0 %v334, 97
        %v344 = vpop.permute.xlu0 %343
        %346 = vrot.lane.b32.xlu0 %v334, 1
        %v347 = vpop.permute.xlu0 %346
        %v349 = vsel %vm325, %v344, %v347
        %v350 = vmul.f32 %v334, %v304
        %v351 = vmul.f32 %v342, %v306
        %v352 = vadd.f32 %v350, %v351
        %v353 = vmul.f32 %v349, %v308
        %v354 = vadd.f32 %v352, %v353
        %355 = vst.msk [vmem:[%s303] sm:$0xff] %vm332, %v354
        %s356 = sand.u32 %s132, 1
        %s357 = scalar_lea.sflag [#allocation4], %s356
        %s358 = sand.u32 %s132, 1
        %s359 = smul.addr %s358, 8
        %s360 = scalar_lea.vmem [#allocation8], %s359
        %s361 = sand.u32 %s160, 1
        %s362 = scalar_lea.sflag [#allocation10], %s361
        %s363 = sand.u32 %s160, 1
        %s364 = smul.addr %s363, 8
        %s365 = scalar_lea.vmem [#allocation9], %s364
        // Predicated region
        $region45: #{tpu_custom_call.1} parent=31 // pred_check
          %p366 = pneg %p142
        $region46: #{tpu_custom_call.1} parent=31 // pred_check_branch
          %368 = sbr.rel (%p366) target = $region48
        $region47: #{tpu_custom_call.1} parent=31 // pred_region
          %s370 = ssub.s32 128, 128
          %371 = vsyncadd %s357, %s370
          %s372 = sadd.s32 %s33, %s32
          %s373 = smul.addr %s372, 128
          %s374 = scalar_lea.hbm %s3, %s373
          %s376 = sshll.u32 %s360, 4
          %s377 = int_to_ptr.vmem [resolvable:$true] %s376
          %379 = dma.vmem_to_hbm [thread:$0]  %s377, 128, %s374, %s357
        $region48: #{tpu_custom_call.1} parent=31 // pred_fallthru
          _
        // Predicated region
        $region49: #{tpu_custom_call.1} parent=31 // pred_check
          %p380 = pneg %p170
        $region50: #{tpu_custom_call.1} parent=31 // pred_check_branch
          %382 = sbr.rel (%p380) target = $region52
        $region51: #{tpu_custom_call.1} parent=31 // pred_region
          %s384 = ssub.s32 128, 128
          %385 = vsyncadd %s362, %s384
          %s386 = sadd.s32 %s33, %s32
          %s387 = smul.addr %s386, 128
          %s388 = scalar_lea.hbm %s4, %s387
          %s390 = sshll.u32 %s365, 4
          %s391 = int_to_ptr.vmem [resolvable:$true] %s390
          %393 = dma.vmem_to_hbm [thread:$0]  %s391, 128, %s388, %s362
        $region52: #{tpu_custom_call.1} parent=31 // pred_fallthru
          _
      $region32: #{tpu_custom_call.1} parent=5 // pred_fallthru
        _
      %p394 = scmp.le.s32.totalorder 2, %s23
      // Predicated region
      $region53: #{tpu_custom_call.1} parent=5 // pred_check
        %p395 = pneg %p394
      $region54: #{tpu_custom_call.1} parent=5 // pred_check_branch
        %397 = sbr.rel (%p395) target = $region56
      $region55: #{tpu_custom_call.1} parent=5 // pred_region
        %s398 = ssub.s32 %s23, 2
        // Predicated region
        $region57: #{tpu_custom_call.1} parent=55 // pred_check
          %p399 = pneg %p148
        $region58: #{tpu_custom_call.1} parent=55 // pred_check_branch
          %401 = sbr.rel (%p399) target = $region60
        $region59: #{tpu_custom_call.1} parent=55 // pred_region
          %s402 = sand.u32 %s133, 1
          %s403 = scalar_lea.sflag [#allocation4], %s402
          %s404 = sand.u32 %s133, 1
          %s405 = smul.addr %s404, 8
          %s406 = scalar_lea.vmem [#allocation8], %s405
          %407 = dma.done %s403, 128
        $region60: #{tpu_custom_call.1} parent=55 // pred_fallthru
          _
        // Predicated region
        $region61: #{tpu_custom_call.1} parent=55 // pred_check
          %p408 = pneg %p176
        $region62: #{tpu_custom_call.1} parent=55 // pred_check_branch
          %410 = sbr.rel (%p408) target = $region64
        $region63: #{tpu_custom_call.1} parent=55 // pred_region
          %s411 = sand.u32 %s161, 1
          %s412 = scalar_lea.sflag [#allocation10], %s411
          %s413 = sand.u32 %s161, 1
          %s414 = smul.addr %s413, 8
          %s415 = scalar_lea.vmem [#allocation9], %s414
          %416 = dma.done %s412, 128
        $region64: #{tpu_custom_call.1} parent=55 // pred_fallthru
          _
      $region56: #{tpu_custom_call.1} parent=5 // pred_fallthru
        _
    $region6: #{tpu_custom_call.1} parent=1 // loop_footer
      %s27 = sadd.s32 1, %s23
    $region7: #{tpu_custom_call.1} parent=1 // loop_footer_branch
      %22 = sbr.rel target = $region3
    $region8: #{tpu_custom_call.1} parent=1 // loop_exit
      _
    %417 = vsyncpa [#allocation3], 1
    %s418 = scalar_lea.sflag [#allocation3], 1
    %419 = vsyncpa %s418, 1
    %420 = vsyncpa [#allocation6], 1
    %s421 = scalar_lea.sflag [#allocation6], 1
    %422 = vsyncpa %s421, 1
    %423 = vsyncpa [#allocation4], 1
    %s424 = scalar_lea.sflag [#allocation4], 1
    %425 = vsyncpa %s424, 1
    %426 = vsyncpa [#allocation10], 1
    %s427 = scalar_lea.sflag [#allocation10], 1
    %428 = vsyncpa %s427, 1

</llo_original>
